<compile_context>
chip_gen: v7x
topology: tpu7x:2x2x1
jax: 0.10.0
libtpu: 0.0.40
codegen_flags: <defaults>
</compile_context>

<pallas_src>
import functools

import jax
import jax.numpy as jnp
import numpy as np
from jax import lax
from jax.experimental import pallas as pl
from jax.experimental.pallas import tpu as pltpu


def _round_up(x, m):
    return (x + m - 1) // m * m


def _pick_tile_h(Ho, Wo):
    """Largest divisor of Ho with TH*Wo <= 128: keeps per-step intermediates and
    the 1x1 matmul M-dim small while giving several grid points per image."""
    best = 1
    for d in range(1, Ho + 1):
        if Ho % d == 0 and d * Wo <= 128:
            best = d
    return best


def _block_kernel(xp_ref, wdw_ref, b1_ref, wpw_ref, b2_ref, out_ref, *, stride):
    """One (batch image, output-row tile) per grid step.  All refs in VMEM.

    xp_ref : (Hp, Wp, Cin_p)   zero-padded NHWC image (resident across row tiles)
    wdw_ref: (9, Cin_p)        depthwise 3x3 weights, BN1 scale folded in (f32)
    b1_ref : (1, Cin_p)        folded BN1 bias
    wpw_ref: (Cin_p, Cout_p)   pointwise weights, BN2 scale folded in (bf16)
    b2_ref : (1, Cout_p)       folded BN2 bias
    out_ref: (TH, Wo, Cout_p)  one output row tile
    """
    TH, Wo, _ = out_ref.shape
    i = pl.program_id(1)
    row_step = TH * stride
    row0 = pl.multiple_of(i * row_step, row_step)

    def tap(dy, dx):
        # Shifted window read straight from the ref; stride folded into the load.
        if stride == 1:
            return xp_ref[pl.ds(row0 + dy, TH), pl.ds(dx, Wo), :]
        return xp_ref[pl.ds(row0 + dy, TH, stride=stride),
                      pl.ds(dx, Wo, stride=stride), :]

    # Depthwise 3x3 conv as 9 shifted multiply-adds (acc seeded with tap (0,0)).
    acc = tap(0, 0) * wdw_ref[0][None, None, :]
    for k in range(1, 9):
        dy, dx = divmod(k, 3)
        acc = acc + tap(dy, dx) * wdw_ref[k][None, None, :]

    # BN1 (scale folded into weights) bias + ReLU.
    h = jnp.maximum(acc + b1_ref[...], 0.0)                    # (TH, Wo, Cin_p)

    # Pointwise 1x1 conv == channel matmul on the MXU: bf16 inputs, f32 accumulate.
    hm = h.reshape(TH * Wo, h.shape[-1]).astype(jnp.bfloat16)
    y = jnp.dot(hm, wpw_ref[...], preferred_element_type=jnp.float32)

    # BN2 bias + ReLU, lane-dense store (Cout padded to 128).
    y = jnp.maximum(y + b2_ref[...], 0.0)
    out_ref[...] = y.reshape(TH, Wo, -1).astype(out_ref.dtype)


def mobilenet_block_pallas(x_nchw, params, stride=1):
    """Forward pass of the MobileNet Block using a Pallas TPU kernel.

    x_nchw : (N, Cin, H, W) float32
    params : dict with
        w_dw (Cin, 1, 3, 3), bn1_{gamma,beta,mean,var} (Cin,),
        w_pw (Cout, Cin, 1, 1), bn2_{gamma,beta,mean,var} (Cout,)
    returns (N, Cout, Ho, Wo) float32
    """
    eps = 1e-5
    N, Cin, H, W = x_nchw.shape
    Cout = params["w_pw"].shape[0]
    Ho = (H + 2 - 3) // stride + 1
    Wo = (W + 2 - 3) // stride + 1

    # Lane-dense channel padding (channels map to the 128-wide lane axis).
    Cin_p = _round_up(Cin, 128)
    Cout_p = _round_up(Cout, 128)

    # Spatial padding: 1-px halo, enough rows for every strided tap, and a
    # sublane-aligned (multiple of 8) row pitch so shifted windows load cleanly.
    Hp = max(H + 2, (Ho - 1) * stride + 3)
    Wp = _round_up(max(W + 2, (Wo - 1) * stride + 3), 8)

    # Single fused transpose + pad (halo + channel padding) in one XLA pass.
    x_nhwc = jnp.transpose(x_nchw, (0, 2, 3, 1)).astype(jnp.float32)
    xp = jnp.pad(x_nhwc, ((0, 0), (1, Hp - H - 1), (1, Wp - W - 1), (0, Cin_p - Cin)))

    # Fold BN scales into the conv weights (one-time, wrapper-side).
    s1 = params["bn1_gamma"] / jnp.sqrt(params["bn1_var"] + eps)
    b1 = params["bn1_beta"] - params["bn1_mean"] * s1
    s2 = params["bn2_gamma"] / jnp.sqrt(params["bn2_var"] + eps)
    b2 = params["bn2_beta"] - params["bn2_mean"] * s2

    w_dw = jnp.transpose(params["w_dw"][:, 0, :, :], (1, 2, 0)) * s1[None, None, :]
    w_dw = jnp.pad(w_dw, ((0, 0), (0, 0), (0, Cin_p - Cin)))
    w_dw = w_dw.reshape(9, Cin_p).astype(jnp.float32)           # (9, Cin_p)

    w_pw = jnp.transpose(params["w_pw"][:, :, 0, 0], (1, 0)) * s2[None, :]
    w_pw = jnp.pad(w_pw, ((0, Cin_p - Cin), (0, Cout_p - Cout)))
    w_pw = w_pw.astype(jnp.bfloat16)                            # (Cin_p, Cout_p)

    b1 = jnp.pad(b1, (0, Cin_p - Cin)).reshape(1, Cin_p).astype(jnp.float32)
    b2 = jnp.pad(b2, (0, Cout_p - Cout)).reshape(1, Cout_p).astype(jnp.float32)

    TH = _pick_tile_h(Ho, Wo)
    n_th = Ho // TH

    kernel = functools.partial(_block_kernel, stride=stride)

    out_nhwc = pl.pallas_call(
        kernel,
        out_shape=jax.ShapeDtypeStruct((N, Ho, Wo, Cout_p), jnp.float32),
        grid_spec=pltpu.PrefetchScalarGridSpec(
            num_scalar_prefetch=0,
            grid=(N, n_th),
            in_specs=[
                # Image block is the whole padded image; its block index does not
                # change along the row-tile axis, so it stays resident in VMEM.
                pl.BlockSpec((None, Hp, Wp, Cin_p), lambda n, i: (n, 0, 0, 0)),
                pl.BlockSpec((9, Cin_p), lambda n, i: (0, 0)),
                pl.BlockSpec((1, Cin_p), lambda n, i: (0, 0)),
                pl.BlockSpec((Cin_p, Cout_p), lambda n, i: (0, 0)),
                pl.BlockSpec((1, Cout_p), lambda n, i: (0, 0)),
            ],
            out_specs=pl.BlockSpec((None, TH, Wo, Cout_p), lambda n, i: (n, i, 0, 0)),
        ),
        compiler_params=pltpu.CompilerParams(
            dimension_semantics=("parallel", "parallel"),
            vmem_limit_bytes=32 * 1024 * 1024,
        ),
    )(xp, w_dw, b1, w_pw, b2)

    out_nhwc = out_nhwc[..., :Cout]                              # drop channel padding
    return jnp.transpose(out_nhwc, (0, 3, 1, 2))                 # back to NCHW


def mobilenet_block_ref(x_nchw, params, stride=1):
    """Pure-JAX reference (lax.conv) for correctness checking, eval-mode BN."""
    eps = 1e-5
    Cin = x_nchw.shape[1]
    y = lax.conv_general_dilated(
        x_nchw, params["w_dw"], window_strides=(stride, stride),
        padding=((1, 1), (1, 1)), feature_group_count=Cin,
        dimension_numbers=("NCHW", "OIHW", "NCHW"))
    s1 = (params["bn1_gamma"] / jnp.sqrt(params["bn1_var"] + eps))
    b1 = params["bn1_beta"] - params["bn1_mean"] * s1
    y = jnp.maximum(y * s1[None, :, None, None] + b1[None, :, None, None], 0.0)
    y = lax.conv_general_dilated(
        y, params["w_pw"], window_strides=(1, 1), padding=((0, 0), (0, 0)),
        dimension_numbers=("NCHW", "OIHW", "NCHW"))
    s2 = (params["bn2_gamma"] / jnp.sqrt(params["bn2_var"] + eps))
    b2 = params["bn2_beta"] - params["bn2_mean"] * s2
    y = jnp.maximum(y * s2[None, :, None, None] + b2[None, :, None, None], 0.0)
    return y


def make_params(key, in_planes, out_planes):
    ks = jax.random.split(key, 8)
    return {
        "w_dw": 0.2 * jax.random.normal(ks[0], (in_planes, 1, 3, 3), jnp.float32),
        "bn1_gamma": 1.0 + 0.1 * jax.random.normal(ks[1], (in_planes,), jnp.float32),
        "bn1_beta": 0.1 * jax.random.normal(ks[2], (in_planes,), jnp.float32),
        "bn1_mean": 0.1 * jax.random.normal(ks[3], (in_planes,), jnp.float32),
        "bn1_var": jnp.abs(1.0 + 0.1 * jax.random.normal(ks[4], (in_planes,), jnp.float32)),
        "w_pw": 0.2 * jax.random.normal(ks[5], (out_planes, in_planes, 1, 1), jnp.float32),
        "bn2_gamma": 1.0 + 0.1 * jax.random.normal(ks[6], (out_planes,), jnp.float32),
        "bn2_beta": 0.1 * jax.random.normal(ks[7], (out_planes,), jnp.float32),
        "bn2_mean": jnp.zeros((out_planes,), jnp.float32),
        "bn2_var": jnp.ones((out_planes,), jnp.float32),
    }


if __name__ == "__main__":
    key = jax.random.PRNGKey(0)
    k_x, k_p = jax.random.split(key)

    N, Cin, Cout, H, W, stride = 2, 4, 8, 16, 16, 1
    x = jax.random.normal(k_x, (N, Cin, H, W), jnp.float32)   # NCHW, like PyTorch
    params = make_params(k_p, Cin, Cout)

    out = mobilenet_block_pallas(x, params, stride=stride)
    out = jax.block_until_ready(out)

    ref = jax.block_until_ready(mobilenet_block_ref(x, params, stride=stride))
    # bf16 MXU inputs for the pointwise conv -> slightly looser tolerance.
    np.testing.assert_allclose(np.asarray(out), np.asarray(ref), rtol=2e-2, atol=2e-2)

    print("KERNEL_OK")
</pallas_src>

<mosaic_0001>
module attributes {stable_mosaic.version = 11 : i64} {
  func.func @_block_kernel(%arg0: i32, %arg1: i32, %arg2: memref<1x18x24x128xf32, #tpu.memory_space<vmem>>, %arg3: memref<9x128xf32, #tpu.memory_space<vmem>>, %arg4: memref<1x128xf32, #tpu.memory_space<vmem>>, %arg5: memref<128x128xbf16, #tpu.memory_space<vmem>>, %arg6: memref<1x128xf32, #tpu.memory_space<vmem>>, %arg7: memref<1x8x16x128xf32, #tpu.memory_space<vmem>>) attributes {dimension_semantics = [#tpu.dimension_semantics<parallel>, #tpu.dimension_semantics<parallel>], iteration_bounds = array<i64: 2, 2>, scalar_prefetch = 0 : i64, scratch_operands = 0 : i64, tpu.core_type = #tpu.core_type<tc>, window_params = [{transform_indices = @transform_0, window_bounds = array<i64: 1, 18, 24, 128>}, {pipeline_mode = #tpu.pipeline_mode<synchronous>, transform_indices = @transform_1, window_bounds = array<i64: 9, 128>}, {pipeline_mode = #tpu.pipeline_mode<synchronous>, transform_indices = @transform_2, window_bounds = array<i64: 1, 128>}, {pipeline_mode = #tpu.pipeline_mode<synchronous>, transform_indices = @transform_3, window_bounds = array<i64: 128, 128>}, {pipeline_mode = #tpu.pipeline_mode<synchronous>, transform_indices = @transform_4, window_bounds = array<i64: 1, 128>}, {transform_indices = @transform_5, window_bounds = array<i64: 1, 8, 16, 128>}]} {
    %c8_i32 = arith.constant 8 : i32
    %0 = arith.muli %arg1, %c8_i32 : i32
    %1 = tpu.assume_multiple %0, 8 : i32
    %c0_i32 = arith.constant 0 : i32
    %2 = arith.addi %1, %c0_i32 : i32
    %c0 = arith.constant 0 : index
    %3 = arith.index_cast %2 : i32 to index
    %c0_0 = arith.constant 0 : index
    %c0_1 = arith.constant 0 : index
    %4 = vector.load %arg2[%c0, %3, %c0_0, %c0_1] : memref<1x18x24x128xf32, #tpu.memory_space<vmem>>, vector<1x8x16x128xf32>
    %5 = vector.shape_cast %4 : vector<1x8x16x128xf32> to vector<8x16x128xf32>
    %c0_2 = arith.constant 0 : index
    %c0_3 = arith.constant 0 : index
    %6 = vector.load %arg3[%c0_2, %c0_3] : memref<9x128xf32, #tpu.memory_space<vmem>>, vector<1x128xf32>
    %7 = vector.shape_cast %6 : vector<1x128xf32> to vector<128xf32>
    %8 = vector.shape_cast %7 : vector<128xf32> to vector<1x1x128xf32>
    %9 = vector.broadcast %8 : vector<1x1x128xf32> to vector<8x16x128xf32>
    %10 = arith.mulf %5, %9 : vector<8x16x128xf32>
    %c0_i32_4 = arith.constant 0 : i32
    %11 = arith.addi %1, %c0_i32_4 : i32
    %c0_5 = arith.constant 0 : index
    %12 = arith.index_cast %11 : i32 to index
    %c1 = arith.constant 1 : index
    %c0_6 = arith.constant 0 : index
    %13 = vector.load %arg2[%c0_5, %12, %c1, %c0_6] : memref<1x18x24x128xf32, #tpu.memory_space<vmem>>, vector<1x8x16x128xf32>
    %14 = vector.shape_cast %13 : vector<1x8x16x128xf32> to vector<8x16x128xf32>
    %c1_7 = arith.constant 1 : index
    %c0_8 = arith.constant 0 : index
    %15 = vector.load %arg3[%c1_7, %c0_8] : memref<9x128xf32, #tpu.memory_space<vmem>>, vector<1x128xf32>
    %16 = vector.shape_cast %15 : vector<1x128xf32> to vector<128xf32>
    %17 = vector.shape_cast %16 : vector<128xf32> to vector<1x1x128xf32>
    %18 = vector.broadcast %17 : vector<1x1x128xf32> to vector<8x16x128xf32>
    %19 = arith.mulf %14, %18 : vector<8x16x128xf32>
    %20 = arith.addf %10, %19 : vector<8x16x128xf32>
    %c0_i32_9 = arith.constant 0 : i32
    %21 = arith.addi %1, %c0_i32_9 : i32
    %c0_10 = arith.constant 0 : index
    %22 = arith.index_cast %21 : i32 to index
    %c2 = arith.constant 2 : index
    %c0_11 = arith.constant 0 : index
    %23 = vector.load %arg2[%c0_10, %22, %c2, %c0_11] : memref<1x18x24x128xf32, #tpu.memory_space<vmem>>, vector<1x8x16x128xf32>
    %24 = vector.shape_cast %23 : vector<1x8x16x128xf32> to vector<8x16x128xf32>
    %c2_12 = arith.constant 2 : index
    %c0_13 = arith.constant 0 : index
    %25 = vector.load %arg3[%c2_12, %c0_13] : memref<9x128xf32, #tpu.memory_space<vmem>>, vector<1x128xf32>
    %26 = vector.shape_cast %25 : vector<1x128xf32> to vector<128xf32>
    %27 = vector.shape_cast %26 : vector<128xf32> to vector<1x1x128xf32>
    %28 = vector.broadcast %27 : vector<1x1x128xf32> to vector<8x16x128xf32>
    %29 = arith.mulf %24, %28 : vector<8x16x128xf32>
    %30 = arith.addf %20, %29 : vector<8x16x128xf32>
    %c1_i32 = arith.constant 1 : i32
    %31 = arith.addi %1, %c1_i32 : i32
    %c0_14 = arith.constant 0 : index
    %32 = arith.index_cast %31 : i32 to index
    %c0_15 = arith.constant 0 : index
    %c0_16 = arith.constant 0 : index
    %33 = vector.load %arg2[%c0_14, %32, %c0_15, %c0_16] : memref<1x18x24x128xf32, #tpu.memory_space<vmem>>, vector<1x8x16x128xf32>
    %34 = vector.shape_cast %33 : vector<1x8x16x128xf32> to vector<8x16x128xf32>
    %c3 = arith.constant 3 : index
    %c0_17 = arith.constant 0 : index
    %35 = vector.load %arg3[%c3, %c0_17] : memref<9x128xf32, #tpu.memory_space<vmem>>, vector<1x128xf32>
    %36 = vector.shape_cast %35 : vector<1x128xf32> to vector<128xf32>
    %37 = vector.shape_cast %36 : vector<128xf32> to vector<1x1x128xf32>
    %38 = vector.broadcast %37 : vector<1x1x128xf32> to vector<8x16x128xf32>
    %39 = arith.mulf %34, %38 : vector<8x16x128xf32>
    %40 = arith.addf %30, %39 : vector<8x16x128xf32>
    %c1_i32_18 = arith.constant 1 : i32
    %41 = arith.addi %1, %c1_i32_18 : i32
    %c0_19 = arith.constant 0 : index
    %42 = arith.index_cast %41 : i32 to index
    %c1_20 = arith.constant 1 : index
    %c0_21 = arith.constant 0 : index
    %43 = vector.load %arg2[%c0_19, %42, %c1_20, %c0_21] : memref<1x18x24x128xf32, #tpu.memory_space<vmem>>, vector<1x8x16x128xf32>
    %44 = vector.shape_cast %43 : vector<1x8x16x128xf32> to vector<8x16x128xf32>
    %c4 = arith.constant 4 : index
    %c0_22 = arith.constant 0 : index
    %45 = vector.load %arg3[%c4, %c0_22] : memref<9x128xf32, #tpu.memory_space<vmem>>, vector<1x128xf32>
    %46 = vector.shape_cast %45 : vector<1x128xf32> to vector<128xf32>
    %47 = vector.shape_cast %46 : vector<128xf32> to vector<1x1x128xf32>
    %48 = vector.broadcast %47 : vector<1x1x128xf32> to vector<8x16x128xf32>
    %49 = arith.mulf %44, %48 : vector<8x16x128xf32>
    %50 = arith.addf %40, %49 : vector<8x16x128xf32>
    %c1_i32_23 = arith.constant 1 : i32
    %51 = arith.addi %1, %c1_i32_23 : i32
    %c0_24 = arith.constant 0 : index
    %52 = arith.index_cast %51 : i32 to index
    %c2_25 = arith.constant 2 : index
    %c0_26 = arith.constant 0 : index
    %53 = vector.load %arg2[%c0_24, %52, %c2_25, %c0_26] : memref<1x18x24x128xf32, #tpu.memory_space<vmem>>, vector<1x8x16x128xf32>
    %54 = vector.shape_cast %53 : vector<1x8x16x128xf32> to vector<8x16x128xf32>
    %c5 = arith.constant 5 : index
    %c0_27 = arith.constant 0 : index
    %55 = vector.load %arg3[%c5, %c0_27] : memref<9x128xf32, #tpu.memory_space<vmem>>, vector<1x128xf32>
    %56 = vector.shape_cast %55 : vector<1x128xf32> to vector<128xf32>
    %57 = vector.shape_cast %56 : vector<128xf32> to vector<1x1x128xf32>
    %58 = vector.broadcast %57 : vector<1x1x128xf32> to vector<8x16x128xf32>
    %59 = arith.mulf %54, %58 : vector<8x16x128xf32>
    %60 = arith.addf %50, %59 : vector<8x16x128xf32>
    %c2_i32 = arith.constant 2 : i32
    %61 = arith.addi %1, %c2_i32 : i32
    %c0_28 = arith.constant 0 : index
    %62 = arith.index_cast %61 : i32 to index
    %c0_29 = arith.constant 0 : index
    %c0_30 = arith.constant 0 : index
    %63 = vector.load %arg2[%c0_28, %62, %c0_29, %c0_30] : memref<1x18x24x128xf32, #tpu.memory_space<vmem>>, vector<1x8x16x128xf32>
    %64 = vector.shape_cast %63 : vector<1x8x16x128xf32> to vector<8x16x128xf32>
    %c6 = arith.constant 6 : index
    %c0_31 = arith.constant 0 : index
    %65 = vector.load %arg3[%c6, %c0_31] : memref<9x128xf32, #tpu.memory_space<vmem>>, vector<1x128xf32>
    %66 = vector.shape_cast %65 : vector<1x128xf32> to vector<128xf32>
    %67 = vector.shape_cast %66 : vector<128xf32> to vector<1x1x128xf32>
    %68 = vector.broadcast %67 : vector<1x1x128xf32> to vector<8x16x128xf32>
    %69 = arith.mulf %64, %68 : vector<8x16x128xf32>
    %70 = arith.addf %60, %69 : vector<8x16x128xf32>
    %c2_i32_32 = arith.constant 2 : i32
    %71 = arith.addi %1, %c2_i32_32 : i32
    %c0_33 = arith.constant 0 : index
    %72 = arith.index_cast %71 : i32 to index
    %c1_34 = arith.constant 1 : index
    %c0_35 = arith.constant 0 : index
    %73 = vector.load %arg2[%c0_33, %72, %c1_34, %c0_35] : memref<1x18x24x128xf32, #tpu.memory_space<vmem>>, vector<1x8x16x128xf32>
    %74 = vector.shape_cast %73 : vector<1x8x16x128xf32> to vector<8x16x128xf32>
    %c7 = arith.constant 7 : index
    %c0_36 = arith.constant 0 : index
    %75 = vector.load %arg3[%c7, %c0_36] : memref<9x128xf32, #tpu.memory_space<vmem>>, vector<1x128xf32>
    %76 = vector.shape_cast %75 : vector<1x128xf32> to vector<128xf32>
    %77 = vector.shape_cast %76 : vector<128xf32> to vector<1x1x128xf32>
    %78 = vector.broadcast %77 : vector<1x1x128xf32> to vector<8x16x128xf32>
    %79 = arith.mulf %74, %78 : vector<8x16x128xf32>
    %80 = arith.addf %70, %79 : vector<8x16x128xf32>
    %c2_i32_37 = arith.constant 2 : i32
    %81 = arith.addi %1, %c2_i32_37 : i32
    %c0_38 = arith.constant 0 : index
    %82 = arith.index_cast %81 : i32 to index
    %c2_39 = arith.constant 2 : index
    %c0_40 = arith.constant 0 : index
    %83 = vector.load %arg2[%c0_38, %82, %c2_39, %c0_40] : memref<1x18x24x128xf32, #tpu.memory_space<vmem>>, vector<1x8x16x128xf32>
    %84 = vector.shape_cast %83 : vector<1x8x16x128xf32> to vector<8x16x128xf32>
    %c8 = arith.constant 8 : index
    %c0_41 = arith.constant 0 : index
    %85 = vector.load %arg3[%c8, %c0_41] : memref<9x128xf32, #tpu.memory_space<vmem>>, vector<1x128xf32>
    %86 = vector.shape_cast %85 : vector<1x128xf32> to vector<128xf32>
    %87 = vector.shape_cast %86 : vector<128xf32> to vector<1x1x128xf32>
    %88 = vector.broadcast %87 : vector<1x1x128xf32> to vector<8x16x128xf32>
    %89 = arith.mulf %84, %88 : vector<8x16x128xf32>
    %90 = arith.addf %80, %89 : vector<8x16x128xf32>
    %c0_42 = arith.constant 0 : index
    %c0_43 = arith.constant 0 : index
    %91 = vector.load %arg4[%c0_42, %c0_43] : memref<1x128xf32, #tpu.memory_space<vmem>>, vector<1x128xf32>
    %92 = vector.shape_cast %91 : vector<1x128xf32> to vector<1x1x128xf32>
    %93 = vector.broadcast %92 : vector<1x1x128xf32> to vector<8x16x128xf32>
    %94 = arith.addf %90, %93 : vector<8x16x128xf32>
    %cst = arith.constant 0.000000e+00 : f32
    %95 = vector.broadcast %cst : f32 to vector<8x16x128xf32>
    %96 = arith.maximumf %94, %95 : vector<8x16x128xf32>
    %97 = vector.shape_cast %96 : vector<8x16x128xf32> to vector<128x128xf32>
    %98 = arith.truncf %97 : vector<128x128xf32> to vector<128x128xbf16>
    %c0_44 = arith.constant 0 : index
    %c0_45 = arith.constant 0 : index
    %99 = vector.load %arg5[%c0_44, %c0_45] : memref<128x128xbf16, #tpu.memory_space<vmem>>, vector<128x128xbf16>
    %cst_46 = arith.constant dense<0.000000e+00> : vector<128x128xf32>
    %100 = tpu.matmul %98, %99, %cst_46 {dimension_numbers = #tpu.dot_dimension_numbers<[1], [0], [0], [1], [0, 0, 1, 1], [], []>} : vector<128x128xbf16>, vector<128x128xbf16>, vector<128x128xf32> -> vector<128x128xf32>
    %c0_47 = arith.constant 0 : index
    %c0_48 = arith.constant 0 : index
    %101 = vector.load %arg6[%c0_47, %c0_48] : memref<1x128xf32, #tpu.memory_space<vmem>>, vector<1x128xf32>
    %102 = vector.broadcast %101 : vector<1x128xf32> to vector<128x128xf32>
    %103 = arith.addf %100, %102 : vector<128x128xf32>
    %cst_49 = arith.constant 0.000000e+00 : f32
    %104 = vector.broadcast %cst_49 : f32 to vector<128x128xf32>
    %105 = arith.maximumf %103, %104 : vector<128x128xf32>
    %106 = vector.shape_cast %105 : vector<128x128xf32> to vector<8x16x128xf32>
    %c0_50 = arith.constant 0 : index
    %c0_51 = arith.constant 0 : index
    %c0_52 = arith.constant 0 : index
    %c0_53 = arith.constant 0 : index
    %107 = vector.load %arg7[%c0_50, %c0_51, %c0_52, %c0_53] : memref<1x8x16x128xf32, #tpu.memory_space<vmem>>, vector<1x8x16x128xf32>
    %108 = vector.shape_cast %107 : vector<1x8x16x128xf32> to vector<8x16x128xf32>
    %109 = vector.shape_cast %106 : vector<8x16x128xf32> to vector<1x8x16x128xf32>
    tpu.vector_store %arg7[%c0_50, %c0_51, %c0_52, %c0_53], %109 {strides = array<i32>} : memref<1x8x16x128xf32, #tpu.memory_space<vmem>>, vector<1x8x16x128xf32>,
    return
  }
  func.func @transform_0(%arg0: i32, %arg1: i32) -> (i32, i32, i32, i32) {
    %c0_i32 = arith.constant 0 : i32
    %c0_i32_0 = arith.constant 0 : i32
    %c0_i32_1 = arith.constant 0 : i32
    %c0_i32_2 = arith.constant 0 : i32
    return %arg0, %c0_i32, %c0_i32_0, %c0_i32_1 : i32, i32, i32, i32
  }
  func.func @transform_1(%arg0: i32, %arg1: i32) -> (i32, i32) {
    %c0_i32 = arith.constant 0 : i32
    %c0_i32_0 = arith.constant 0 : i32
    %c0_i32_1 = arith.constant 0 : i32
    return %c0_i32, %c0_i32_0 : i32, i32
  }
  func.func @transform_2(%arg0: i32, %arg1: i32) -> (i32, i32) {
    %c0_i32 = arith.constant 0 : i32
    %c0_i32_0 = arith.constant 0 : i32
    %c0_i32_1 = arith.constant 0 : i32
    return %c0_i32, %c0_i32_0 : i32, i32
  }
  func.func @transform_3(%arg0: i32, %arg1: i32) -> (i32, i32) {
    %c0_i32 = arith.constant 0 : i32
    %c0_i32_0 = arith.constant 0 : i32
    %c0_i32_1 = arith.constant 0 : i32
    return %c0_i32, %c0_i32_0 : i32, i32
  }
  func.func @transform_4(%arg0: i32, %arg1: i32) -> (i32, i32) {
    %c0_i32 = arith.constant 0 : i32
    %c0_i32_0 = arith.constant 0 : i32
    %c0_i32_1 = arith.constant 0 : i32
    return %c0_i32, %c0_i32_0 : i32, i32
  }
  func.func @transform_5(%arg0: i32, %arg1: i32) -> (i32, i32, i32, i32) {
    %c0_i32 = arith.constant 0 : i32
    %c0_i32_0 = arith.constant 0 : i32
    %c0_i32_1 = arith.constant 0 : i32
    return %arg0, %arg1, %c0_i32, %c0_i32_0 : i32, i32, i32, i32
  }
}

</mosaic_0001>

<llo_original>
// kernel: tpu_custom_call.1
$region0: #{tpu_custom_call.1}
  #allocation0 [shape = 'u32[]', space=smem, size = 0x4, offset = 0x4, fixed_abs, tag = 'smem constant byte address 0x4 - core index']
  #allocation1 [shape = 'u32[144,128]{1,0:T(1,128)}', space=vmem, size = 0x12000, scoped, tag = 'internal scratch']
  %s0 = inlined_call_operand.hbm [shape: f32[2,18,24,128], index: 0, kind: input, shape index: {}]
  %s1 = inlined_call_operand.hbm [shape: f32[9,128], index: 1, kind: input, shape index: {}]
  %s2 = inlined_call_operand.vmem [shape: f32[1,128], index: 2, kind: input, shape index: {}]
  %s3 = inlined_call_operand.hbm [shape: bf16[128,128], index: 3, kind: input, shape index: {}]
  %s4 = inlined_call_operand.vmem [shape: f32[1,128], index: 4, kind: input, shape index: {}]
  %s5 = inlined_call_operand.hbm [shape: f32[2,16,16,128], index: 5, kind: output, shape index: {}]
  %s6 = sld [smem:[#allocation0]]
  $region65: #{tpu_custom_call.1} parent=0
    _
  %s8 = ssub.s32 1, %s6
  %s9 = scalar_select 0, %s8, %s6
  $region1: #{tpu_custom_call.1} parent=0
    #allocation2 [shape = 'u8[442368]{0}', space=vmem, size = 0x6c000, scoped, tag = 'input window, operand 0']
    #allocation3 [shape = 's32[2]{0}', space=sflag, size = 0x8, scoped, tag = 'scoped memory for tpu_custom_call.1']
    #allocation4 [shape = 's32[2]{0}', space=sflag, size = 0x8, scoped, tag = 'scoped memory for tpu_custom_call.1']
    #allocation5 [shape = 'u8[8192]{0}', space=vmem, size = 0x2000, scoped, tag = 'input window, operand 1, single buffered']
    #allocation6 [shape = 's32[1]{0}', space=sflag, size = 0x4, scoped, tag = 'scoped memory for tpu_custom_call.1']
    #allocation7 [shape = 'u8[32768]{0}', space=vmem, size = 0x8000, scoped, tag = 'input window, operand 3, single buffered']
    #allocation8 [shape = 'u8[131072]{0}', space=vmem, size = 0x20000, scoped, tag = 'output window, operand 0']
    %10 = vsyncpa [#allocation3], 0
    %s11 = scalar_lea.sflag [#allocation3], 1
    %12 = vsyncpa %s11, 0
    %13 = vsyncpa [#allocation6], 0
    %14 = vsyncpa [#allocation4], 0
    %s15 = scalar_lea.sflag [#allocation4], 1
    %16 = vsyncpa %s15, 0
    loop: start=0, step=1, limit=6
    $region2: #{tpu_custom_call.1} parent=1 // loop_pre_header
      _
    $region3: #{tpu_custom_call.1} parent=1 // loop_header
      %s18 = sphi 0, %s22
      %p19 = scmp.ge.s32.totalorder %s18, 6
      %s25 = sphi 0, %s37
      %s26 = sphi 0, %s33
      %s27 = sphi 0, %s25
      %s28 = sphi 0, %s26
      %s29 = sphi 0, %s27
      %s30 = sphi 0, %s28
      %s40 = sphi 0, %s42
      %s43 = sphi 0, %s40
      %s44 = sphi 0, %s43
      %s60 = sphi 0, %s44
      %s64 = sphi 0, %s64
      %s66 = sphi 0, %s64
      %s67 = sphi 0, %s66
      %s81 = sphi 0, %s67
      %s85 = sphi 0, %s85
      %s87 = sphi 0, %s85
      %s88 = sphi 0, %s87
      %s102 = sphi 0, %s88
      %s106 = sphi 0, %s106
      %s108 = sphi 0, %s106
      %s109 = sphi 0, %s108
      %s123 = sphi 0, %s109
      %s127 = sphi 0, %s127
      %s129 = sphi 0, %s127
      %s130 = sphi 0, %s129
      %s144 = sphi 0, %s130
      %s152 = sphi 0, %s154
      %s155 = sphi 0, %s152
      %s156 = sphi 0, %s155
      %s172 = sphi 0, %s156
    $region4: #{tpu_custom_call.1} parent=1 // loop_header_branch
      %21 = sbr.rel (%p19) target = $region8
    $region5: #{tpu_custom_call.1} parent=1 // loop_body
      %s23 = ssub.s32 %s18, 1
      %s24 = ssub.s32 %s18, 2
      %s31 = sadd.s32 1, %s26
      %p32 = scmp.ge.s32.totalorder %s31, 2
      %s33 = scalar_select %p32, 0, %s31
      %s34 = sadd.s32 1, %s25
      %s35 = scalar_select %p32, %s34, %s25
      %p36 = scmp.ge.s32.totalorder %s35, 2
      %s37 = scalar_select %p36, 0, %s35
      %s38 = ssub.s32 %s25, %s37
      %p39 = scmp.eq.s32.totalorder %s38, 0
      %s41 = sadd.s32 %s40, 1
      %s42 = scalar_select %p39, %s40, %s41
      %p45 = pneg %p39
      %p46 = scmp.eq.s32.totalorder %s18, 3
      %p47 = por %p45, %p46
      %p48 = scmp.ne.s32.totalorder %s40, %s43
      %p49 = scmp.eq.s32.totalorder %s18, 0
      %p50 = por %p48, %p49
      %p51 = scmp.ne.s32.totalorder %s40, %s43
      %p52 = scmp.eq.s32.totalorder %s23, 3
      %p53 = por %p51, %p52
      %p54 = scmp.ne.s32.totalorder %s43, %s44
      %p55 = scmp.eq.s32.totalorder %s23, 0
      %p56 = por %p54, %p55
      %p57 = scmp.ne.s32.totalorder %s43, %s44
      %p58 = scmp.eq.s32.totalorder %s24, 3
      %p59 = por %p57, %p58
      %p61 = scmp.ne.s32.totalorder %s44, %s60
      %p62 = scmp.eq.s32.totalorder %s24, 0
      %p63 = por %p61, %p62
      %s65 = sadd.s32 %s64, 1
      %p68 = scmp.eq.s32.totalorder %s18, 3
      %p69 = scmp.ne.s32.totalorder %s64, %s66
      %p70 = scmp.eq.s32.totalorder %s18, 0
      %p71 = por %p69, %p70
      %p72 = scmp.ne.s32.totalorder %s64, %s66
      %p73 = scmp.eq.s32.totalorder %s23, 3
      %p74 = por %p72, %p73
      %p75 = scmp.ne.s32.totalorder %s66, %s67
      %p76 = scmp.eq.s32.totalorder %s23, 0
      %p77 = por %p75, %p76
      %p78 = scmp.ne.s32.totalorder %s66, %s67
      %p79 = scmp.eq.s32.totalorder %s24, 3
      %p80 = por %p78, %p79
      %p82 = scmp.ne.s32.totalorder %s67, %s81
      %p83 = scmp.eq.s32.totalorder %s24, 0
      %p84 = por %p82, %p83
      %s86 = sadd.s32 %s85, 1
      %p89 = scmp.eq.s32.totalorder %s18, 3
      %p90 = scmp.ne.s32.totalorder %s85, %s87
      %p91 = scmp.eq.s32.totalorder %s18, 0
      %p92 = por %p90, %p91
      %p93 = scmp.ne.s32.totalorder %s85, %s87
      %p94 = scmp.eq.s32.totalorder %s23, 3
      %p95 = por %p93, %p94
      %p96 = scmp.ne.s32.totalorder %s87, %s88
      %p97 = scmp.eq.s32.totalorder %s23, 0
      %p98 = por %p96, %p97
      %p99 = scmp.ne.s32.totalorder %s87, %s88
      %p100 = scmp.eq.s32.totalorder %s24, 3
      %p101 = por %p99, %p100
      %p103 = scmp.ne.s32.totalorder %s88, %s102
      %p104 = scmp.eq.s32.totalorder %s24, 0
      %p105 = por %p103, %p104
      %s107 = sadd.s32 %s106, 1
      %p110 = scmp.eq.s32.totalorder %s18, 3
      %p111 = scmp.ne.s32.totalorder %s106, %s108
      %p112 = scmp.eq.s32.totalorder %s18, 0
      %p113 = por %p111, %p112
      %p114 = scmp.ne.s32.totalorder %s106, %s108
      %p115 = scmp.eq.s32.totalorder %s23, 3
      %p116 = por %p114, %p115
      %p117 = scmp.ne.s32.totalorder %s108, %s109
      %p118 = scmp.eq.s32.totalorder %s23, 0
      %p119 = por %p117, %p118
      %p120 = scmp.ne.s32.totalorder %s108, %s109
      %p121 = scmp.eq.s32.totalorder %s24, 3
      %p122 = por %p120, %p121
      %p124 = scmp.ne.s32.totalorder %s109, %s123
      %p125 = scmp.eq.s32.totalorder %s24, 0
      %p126 = por %p124, %p125
      %s128 = sadd.s32 %s127, 1
      %p131 = scmp.eq.s32.totalorder %s18, 3
      %p132 = scmp.ne.s32.totalorder %s127, %s129
      %p133 = scmp.eq.s32.totalorder %s18, 0
      %p134 = por %p132, %p133
      %p135 = scmp.ne.s32.totalorder %s127, %s129
      %p136 = scmp.eq.s32.totalorder %s23, 3
      %p137 = por %p135, %p136
      %p138 = scmp.ne.s32.totalorder %s129, %s130
      %p139 = scmp.eq.s32.totalorder %s23, 0
      %p140 = por %p138, %p139
      %p141 = scmp.ne.s32.totalorder %s129, %s130
      %p142 = scmp.eq.s32.totalorder %s24, 3
      %p143 = por %p141, %p142
      %p145 = scmp.ne.s32.totalorder %s130, %s144
      %p146 = scmp.eq.s32.totalorder %s24, 0
      %p147 = por %p145, %p146
      %s148 = ssub.s32 %s25, %s37
      %s149 = ssub.s32 %s26, %s33
      %s150 = sor.u32 %s148, %s149
      %p151 = scmp.eq.s32.totalorder %s150, 0
      %s153 = sadd.s32 %s152, 1
      %s154 = scalar_select %p151, %s152, %s153
      %p157 = pneg %p151
      %p158 = scmp.eq.s32.totalorder %s18, 3
      %p159 = por %p157, %p158
      %p160 = scmp.ne.s32.totalorder %s152, %s155
      %p161 = scmp.eq.s32.totalorder %s18, 0
      %p162 = por %p160, %p161
      %p163 = scmp.ne.s32.totalorder %s152, %s155
      %p164 = scmp.eq.s32.totalorder %s23, 3
      %p165 = por %p163, %p164
      %p166 = scmp.ne.s32.totalorder %s155, %s156
      %p167 = scmp.eq.s32.totalorder %s23, 0
      %p168 = por %p166, %p167
      %p169 = scmp.ne.s32.totalorder %s155, %s156
      %p170 = scmp.eq.s32.totalorder %s24, 3
      %p171 = por %p169, %p170
      %p173 = scmp.ne.s32.totalorder %s156, %s172
      %p174 = scmp.eq.s32.totalorder %s24, 0
      %p175 = por %p173, %p174
      %p176 = scmp.le.s32.totalorder 1, %s18
      %p177 = scmp.lt.s32.totalorder %s18, 5
      %p178 = pnand %p176, %p177
      %p179 = pneg %p178
      // Predicated region
      $region9: #{tpu_custom_call.1} parent=5 // pred_check
        _
      $region10: #{tpu_custom_call.1} parent=5 // pred_check_branch
        %181 = sbr.rel (%p178) target = $region12
      $region11: #{tpu_custom_call.1} parent=5 // pred_region
        %s182 = ssub.s32 %s18, 1
        // Predicated region
        $region13: #{tpu_custom_call.1} parent=11 // pred_check
          %p183 = pneg %p77
        $region14: #{tpu_custom_call.1} parent=11 // pred_check_branch
          %185 = sbr.rel (%p183) target = $region16
        $region15: #{tpu_custom_call.1} parent=11 // pred_region
          %s187 = ssub.s32 256, 256
          %188 = vsyncadd [#allocation6], %s187
          %s189 = sshll.u32 [#allocation5], 4
          %s190 = int_to_ptr.vmem [resolvable:$true] %s189
          %195 = dma.hbm_to_vmem [thread:$0]  %s1, 256, %s190, [#allocation6], 128, 128, 8
        $region16: #{tpu_custom_call.1} parent=11 // pred_fallthru
          _
        // Predicated region
        $region17: #{tpu_custom_call.1} parent=11 // pred_check
          %p196 = pneg %p98
        $region18: #{tpu_custom_call.1} parent=11 // pred_check_branch
          %198 = sbr.rel (%p196) target = $region20
        $region19: #{tpu_custom_call.1} parent=11 // pred_region
          _
        $region20: #{tpu_custom_call.1} parent=11 // pred_fallthru
          _
        // Predicated region
        $region21: #{tpu_custom_call.1} parent=11 // pred_check
          %p199 = pneg %p119
        $region22: #{tpu_custom_call.1} parent=11 // pred_check_branch
          %201 = sbr.rel (%p199) target = $region24
        $region23: #{tpu_custom_call.1} parent=11 // pred_region
          %s203 = ssub.s32 1024, 1024
          %204 = vsyncadd [#allocation6], %s203
          %s205 = sshll.u32 [#allocation7], 4
          %s206 = int_to_ptr.vmem [resolvable:$true] %s205
          %211 = dma.hbm_to_vmem [thread:$0]  %s3, 1024, %s206, [#allocation6], 64, 64, 4
        $region24: #{tpu_custom_call.1} parent=11 // pred_fallthru
          _
        // Predicated region
        $region25: #{tpu_custom_call.1} parent=11 // pred_check
          %p212 = pneg %p140
        $region26: #{tpu_custom_call.1} parent=11 // pred_check_branch
          %214 = sbr.rel (%p212) target = $region28
        $region27: #{tpu_custom_call.1} parent=11 // pred_region
          _
        $region28: #{tpu_custom_call.1} parent=11 // pred_fallthru
          _
      $region12: #{tpu_custom_call.1} parent=5 // pred_fallthru
        _
      %p215 = scmp.lt.s32.totalorder %s18, 4
      // Predicated region
      $region29: #{tpu_custom_call.1} parent=5 // pred_check
        %p216 = pneg %p215
      $region30: #{tpu_custom_call.1} parent=5 // pred_check_branch
        %218 = sbr.rel (%p216) target = $region32
      $region31: #{tpu_custom_call.1} parent=5 // pred_region
        // Predicated region
        $region33: #{tpu_custom_call.1} parent=31 // pred_check
          %p219 = pneg %p50
        $region34: #{tpu_custom_call.1} parent=31 // pred_check_branch
          %221 = sbr.rel (%p219) target = $region36
        $region35: #{tpu_custom_call.1} parent=31 // pred_region
          %s222 = sand.u32 %s40, 1
          %s223 = scalar_lea.sflag [#allocation3], %s222
          %s224 = sand.u32 %s40, 1
          %s225 = smul.addr %s224, 432
          %s226 = scalar_lea.vmem [#allocation2], %s225
          %s228 = ssub.s32 6912, 6912
          %229 = vsyncadd %s223, %s228
          %s230 = smul.addr %s25, 54
          %s231 = smul.addr %s230, 128
          %s232 = scalar_lea.hbm %s0, %s231
          %s233 = sshll.u32 %s226, 4
          %s234 = int_to_ptr.vmem [resolvable:$true] %s233
          %239 = dma.hbm_to_vmem [thread:$0]  %s232, 6912, %s234, %s223, 128, 128, 8
        $region36: #{tpu_custom_call.1} parent=31 // pred_fallthru
          _
      $region32: #{tpu_custom_call.1} parent=5 // pred_fallthru
        _
      %p240 = scmp.le.s32.totalorder 1, %s18
      %p241 = scmp.lt.s32.totalorder %s18, 5
      %p242 = pnand %p240, %p241
      %p243 = pneg %p242
      // Predicated region
      $region37: #{tpu_custom_call.1} parent=5 // pred_check
        _
      $region38: #{tpu_custom_call.1} parent=5 // pred_check_branch
        %245 = sbr.rel (%p242) target = $region40
      $region39: #{tpu_custom_call.1} parent=5 // pred_region
        %s246 = ssub.s32 %s18, 1
        %s247 = sand.u32 %s43, 1
        %s248 = scalar_lea.sflag [#allocation3], %s247
        %s249 = sand.u32 %s43, 1
        %s250 = smul.addr %s249, 432
        %s251 = scalar_lea.vmem [#allocation2], %s250
        // Predicated region
        $region41: #{tpu_custom_call.1} parent=39 // pred_check
          %p252 = pneg %p56
        $region42: #{tpu_custom_call.1} parent=39 // pred_check_branch
          %254 = sbr.rel (%p252) target = $region44
        $region43: #{tpu_custom_call.1} parent=39 // pred_region
          %255 = dma.done %s248, 6912
        $region44: #{tpu_custom_call.1} parent=39 // pred_fallthru
          _
        // Predicated region
        $region45: #{tpu_custom_call.1} parent=39 // pred_check
          %p256 = pneg %p77
        $region46: #{tpu_custom_call.1} parent=39 // pred_check_branch
          %258 = sbr.rel (%p256) target = $region48
        $region47: #{tpu_custom_call.1} parent=39 // pred_region
          %259 = dma.done [#allocation6], 256
        $region48: #{tpu_custom_call.1} parent=39 // pred_fallthru
          _
        // Predicated region
        $region49: #{tpu_custom_call.1} parent=39 // pred_check
          %p260 = pneg %p119
        $region50: #{tpu_custom_call.1} parent=39 // pred_check_branch
          %262 = sbr.rel (%p260) target = $region52
        $region51: #{tpu_custom_call.1} parent=39 // pred_region
          %263 = dma.done [#allocation6], 1024
        $region52: #{tpu_custom_call.1} parent=39 // pred_fallthru
          _
        %s264 = sand.u32 %s43, 1
        %s265 = scalar_lea.sflag [#allocation3], %s264
        %s266 = sand.u32 %s43, 1
        %s267 = smul.addr %s266, 432
        %s268 = scalar_lea.vmem [#allocation2], %s267
        %p269 = pneg %p56
        %p270 = pneg %p53
        %p271 = pneg %p77
        %p272 = pneg %p74
        %p273 = pneg %p98
        %p274 = pneg %p95
        %p275 = pneg %p119
        %p276 = pneg %p116
        %p277 = pneg %p140
        %p278 = pneg %p137
        %p279 = pneg %p168
        %p280 = pneg %p165
        %s281 = sand.u32 %s155, 1
        %s282 = scalar_lea.sflag [#allocation4], %s281
        %s283 = sand.u32 %s155, 1
        %s284 = smul.addr %s283, 128
        %s285 = scalar_lea.vmem [#allocation8], %s284
        %s286 = smul.u32 8, %s28
        %s288 = smul.u32 %s28, 8
        %s289 = smul.u32 %s288, 24
        %s290 = scalar_lea.vmem %s251, %s289 [#allocation2]
        %v291 = vld [vmem:[%s290] sm:$0xff]
        %v292 = vld [vmem:[%s290 + $0x8] sm:$0xff]
        %v293 = vld [vmem:[%s290 + $0x18] sm:$0xff]
        %v294 = vld [vmem:[%s290 + $0x20] sm:$0xff]
        %v295 = vld [vmem:[%s290 + $0x30] sm:$0xff]
        %v296 = vld [vmem:[%s290 + $0x38] sm:$0xff]
        %v297 = vld [vmem:[%s290 + $0x48] sm:$0xff]
        %v298 = vld [vmem:[%s290 + $0x50] sm:$0xff]
        %v299 = vld [vmem:[%s290 + $0x60] sm:$0xff]
        %v300 = vld [vmem:[%s290 + $0x68] sm:$0xff]
        %v301 = vld [vmem:[%s290 + $0x78] sm:$0xff]
        %v302 = vld [vmem:[%s290 + $0x80] sm:$0xff]
        %v303 = vld [vmem:[%s290 + $0x90] sm:$0xff]
        %v304 = vld [vmem:[%s290 + $0x98] sm:$0xff]
        %v305 = vld [vmem:[%s290 + $0xa8] sm:$0xff]
        %v306 = vld [vmem:[%s290 + $0xb0] sm:$0xff]
        %v307 = vld [vmem:[#allocation5] sm:$0x1]
        %v308 = vlaneseq
        %v309 = vshrl.u32 %v308, 7
        %v310 = vsub.s32 0, %v309
        %v311 = vrot.slane %v307, %v310
        %v312 = vmul.f32 %v291, %v311
        %v313 = vmul.f32 %v292, %v311
        %v314 = vmul.f32 %v293, %v311
        %v315 = vmul.f32 %v294, %v311
        %v316 = vmul.f32 %v295, %v311
        %v317 = vmul.f32 %v296, %v311
        %v318 = vmul.f32 %v297, %v311
        %v319 = vmul.f32 %v298, %v311
        %v320 = vmul.f32 %v299, %v311
        %v321 = vmul.f32 %v300, %v311
        %v322 = vmul.f32 %v301, %v311
        %v323 = vmul.f32 %v302, %v311
        %v324 = vmul.f32 %v303, %v311
        %v325 = vmul.f32 %v304, %v311
        %v326 = vmul.f32 %v305, %v311
        %v327 = vmul.f32 %v306, %v311
        %v328 = vld [vmem:[%s290 + $0x1] sm:$0xff]
        %v329 = vld [vmem:[%s290 + $0x9] sm:$0xff]
        %v330 = vld [vmem:[%s290 + $0x19] sm:$0xff]
        %v331 = vld [vmem:[%s290 + $0x21] sm:$0xff]
        %v332 = vld [vmem:[%s290 + $0x31] sm:$0xff]
        %v333 = vld [vmem:[%s290 + $0x39] sm:$0xff]
        %v334 = vld [vmem:[%s290 + $0x49] sm:$0xff]
        %v335 = vld [vmem:[%s290 + $0x51] sm:$0xff]
        %v336 = vld [vmem:[%s290 + $0x61] sm:$0xff]
        %v337 = vld [vmem:[%s290 + $0x69] sm:$0xff]
        %v338 = vld [vmem:[%s290 + $0x79] sm:$0xff]
        %v339 = vld [vmem:[%s290 + $0x81] sm:$0xff]
        %v340 = vld [vmem:[%s290 + $0x91] sm:$0xff]
        %v341 = vld [vmem:[%s290 + $0x99] sm:$0xff]
        %v342 = vld [vmem:[%s290 + $0xa9] sm:$0xff]
        %v343 = vld [vmem:[%s290 + $0xb1] sm:$0xff]
        %v344 = vld [vmem:[#allocation5 + $0x1] sm:$0x1]
        %v345 = vlaneseq
        %v346 = vshrl.u32 %v345, 7
        %v347 = vsub.s32 0, %v346
        %v348 = vrot.slane %v344, %v347
        %v349 = vmul.f32 %v328, %v348
        %v350 = vmul.f32 %v329, %v348
        %v351 = vmul.f32 %v330, %v348
        %v352 = vmul.f32 %v331, %v348
        %v353 = vmul.f32 %v332, %v348
        %v354 = vmul.f32 %v333, %v348
        %v355 = vmul.f32 %v334, %v348
        %v356 = vmul.f32 %v335, %v348
        %v357 = vmul.f32 %v336, %v348
        %v358 = vmul.f32 %v337, %v348
        %v359 = vmul.f32 %v338, %v348
        %v360 = vmul.f32 %v339, %v348
        %v361 = vmul.f32 %v340, %v348
        %v362 = vmul.f32 %v341, %v348
        %v363 = vmul.f32 %v342, %v348
        %v364 = vmul.f32 %v343, %v348
        %v365 = vadd.f32 %v312, %v349
        %v366 = vadd.f32 %v313, %v350
        %v367 = vadd.f32 %v314, %v351
        %v368 = vadd.f32 %v315, %v352
        %v369 = vadd.f32 %v316, %v353
        %v370 = vadd.f32 %v317, %v354
        %v371 = vadd.f32 %v318, %v355
        %v372 = vadd.f32 %v319, %v356
        %v373 = vadd.f32 %v320, %v357
        %v374 = vadd.f32 %v321, %v358
        %v375 = vadd.f32 %v322, %v359
        %v376 = vadd.f32 %v323, %v360
        %v377 = vadd.f32 %v324, %v361
        %v378 = vadd.f32 %v325, %v362
        %v379 = vadd.f32 %v326, %v363
        %v380 = vadd.f32 %v327, %v364
        %v381 = vld [vmem:[%s290 + $0x2] sm:$0xff]
        %v382 = vld [vmem:[%s290 + $0xa] sm:$0xff]
        %v383 = vld [vmem:[%s290 + $0x1a] sm:$0xff]
        %v384 = vld [vmem:[%s290 + $0x22] sm:$0xff]
        %v385 = vld [vmem:[%s290 + $0x32] sm:$0xff]
        %v386 = vld [vmem:[%s290 + $0x3a] sm:$0xff]
        %v387 = vld [vmem:[%s290 + $0x4a] sm:$0xff]
        %v388 = vld [vmem:[%s290 + $0x52] sm:$0xff]
        %v389 = vld [vmem:[%s290 + $0x62] sm:$0xff]
        %v390 = vld [vmem:[%s290 + $0x6a] sm:$0xff]
        %v391 = vld [vmem:[%s290 + $0x7a] sm:$0xff]
        %v392 = vld [vmem:[%s290 + $0x82] sm:$0xff]
        %v393 = vld [vmem:[%s290 + $0x92] sm:$0xff]
        %v394 = vld [vmem:[%s290 + $0x9a] sm:$0xff]
        %v395 = vld [vmem:[%s290 + $0xaa] sm:$0xff]
        %v396 = vld [vmem:[%s290 + $0xb2] sm:$0xff]
        %v397 = vld [vmem:[#allocation5 + $0x2] sm:$0x1]
        %v398 = vlaneseq
        %v399 = vshrl.u32 %v398, 7
        %v400 = vsub.s32 0, %v399
        %v401 = vrot.slane %v397, %v400
        %v402 = vmul.f32 %v381, %v401
        %v403 = vmul.f32 %v382, %v401
        %v404 = vmul.f32 %v383, %v401
        %v405 = vmul.f32 %v384, %v401
        %v406 = vmul.f32 %v385, %v401
        %v407 = vmul.f32 %v386, %v401
        %v408 = vmul.f32 %v387, %v401
        %v409 = vmul.f32 %v388, %v401
        %v410 = vmul.f32 %v389, %v401
        %v411 = vmul.f32 %v390, %v401
        %v412 = vmul.f32 %v391, %v401
        %v413 = vmul.f32 %v392, %v401
        %v414 = vmul.f32 %v393, %v401
        %v415 = vmul.f32 %v394, %v401
        %v416 = vmul.f32 %v395, %v401
        %v417 = vmul.f32 %v396, %v401
        %v418 = vadd.f32 %v365, %v402
        %v419 = vadd.f32 %v366, %v403
        %v420 = vadd.f32 %v367, %v404
        %v421 = vadd.f32 %v368, %v405
        %v422 = vadd.f32 %v369, %v406
        %v423 = vadd.f32 %v370, %v407
        %v424 = vadd.f32 %v371, %v408
        %v425 = vadd.f32 %v372, %v409
        %v426 = vadd.f32 %v373, %v410
        %v427 = vadd.f32 %v374, %v411
        %v428 = vadd.f32 %v375, %v412
        %v429 = vadd.f32 %v376, %v413
        %v430 = vadd.f32 %v377, %v414
        %v431 = vadd.f32 %v378, %v415
        %v432 = vadd.f32 %v379, %v416
        %v433 = vadd.f32 %v380, %v417
        %s434 = sadd.s32 %s288, 1
        %s435 = smul.u32 %s434, 24
        %s436 = scalar_lea.vmem %s251, %s435 [#allocation2]
        %v437 = vld [vmem:[%s436] sm:$0xff]
        %v438 = vld [vmem:[%s436 + $0x8] sm:$0xff]
        %v439 = vld [vmem:[%s436 + $0x18] sm:$0xff]
        %v440 = vld [vmem:[%s436 + $0x20] sm:$0xff]
        %v441 = vld [vmem:[%s436 + $0x30] sm:$0xff]
        %v442 = vld [vmem:[%s436 + $0x38] sm:$0xff]
        %v443 = vld [vmem:[%s436 + $0x48] sm:$0xff]
        %v444 = vld [vmem:[%s436 + $0x50] sm:$0xff]
        %v445 = vld [vmem:[%s436 + $0x60] sm:$0xff]
        %v446 = vld [vmem:[%s436 + $0x68] sm:$0xff]
        %v447 = vld [vmem:[%s436 + $0x78] sm:$0xff]
        %v448 = vld [vmem:[%s436 + $0x80] sm:$0xff]
        %v449 = vld [vmem:[%s436 + $0x90] sm:$0xff]
        %v450 = vld [vmem:[%s436 + $0x98] sm:$0xff]
        %v451 = vld [vmem:[%s436 + $0xa8] sm:$0xff]
        %v452 = vld [vmem:[%s436 + $0xb0] sm:$0xff]
        %v453 = vld [vmem:[#allocation5 + $0x3] sm:$0x1]
        %v454 = vlaneseq
        %v455 = vshrl.u32 %v454, 7
        %v456 = vsub.s32 0, %v455
        %v457 = vrot.slane %v453, %v456
        %v458 = vmul.f32 %v437, %v457
        %v459 = vmul.f32 %v438, %v457
        %v460 = vmul.f32 %v439, %v457
        %v461 = vmul.f32 %v440, %v457
        %v462 = vmul.f32 %v441, %v457
        %v463 = vmul.f32 %v442, %v457
        %v464 = vmul.f32 %v443, %v457
        %v465 = vmul.f32 %v444, %v457
        %v466 = vmul.f32 %v445, %v457
        %v467 = vmul.f32 %v446, %v457
        %v468 = vmul.f32 %v447, %v457
        %v469 = vmul.f32 %v448, %v457
        %v470 = vmul.f32 %v449, %v457
        %v471 = vmul.f32 %v450, %v457
        %v472 = vmul.f32 %v451, %v457
        %v473 = vmul.f32 %v452, %v457
        %v474 = vadd.f32 %v418, %v458
        %v475 = vadd.f32 %v419, %v459
        %v476 = vadd.f32 %v420, %v460
        %v477 = vadd.f32 %v421, %v461
        %v478 = vadd.f32 %v422, %v462
        %v479 = vadd.f32 %v423, %v463
        %v480 = vadd.f32 %v424, %v464
        %v481 = vadd.f32 %v425, %v465
        %v482 = vadd.f32 %v426, %v466
        %v483 = vadd.f32 %v427, %v467
        %v484 = vadd.f32 %v428, %v468
        %v485 = vadd.f32 %v429, %v469
        %v486 = vadd.f32 %v430, %v470
        %v487 = vadd.f32 %v431, %v471
        %v488 = vadd.f32 %v432, %v472
        %v489 = vadd.f32 %v433, %v473
        %v490 = vld [vmem:[%s436 + $0x1] sm:$0xff]
        %v491 = vld [vmem:[%s436 + $0x9] sm:$0xff]
        %v492 = vld [vmem:[%s436 + $0x19] sm:$0xff]
        %v493 = vld [vmem:[%s436 + $0x21] sm:$0xff]
        %v494 = vld [vmem:[%s436 + $0x31] sm:$0xff]
        %v495 = vld [vmem:[%s436 + $0x39] sm:$0xff]
        %v496 = vld [vmem:[%s436 + $0x49] sm:$0xff]
        %v497 = vld [vmem:[%s436 + $0x51] sm:$0xff]
        %v498 = vld [vmem:[%s436 + $0x61] sm:$0xff]
        %v499 = vld [vmem:[%s436 + $0x69] sm:$0xff]
        %v500 = vld [vmem:[%s436 + $0x79] sm:$0xff]
        %v501 = vld [vmem:[%s436 + $0x81] sm:$0xff]
        %v502 = vld [vmem:[%s436 + $0x91] sm:$0xff]
        %v503 = vld [vmem:[%s436 + $0x99] sm:$0xff]
        %v504 = vld [vmem:[%s436 + $0xa9] sm:$0xff]
        %v505 = vld [vmem:[%s436 + $0xb1] sm:$0xff]
        %v506 = vld [vmem:[#allocation5 + $0x4] sm:$0x1]
        %v507 = vlaneseq
        %v508 = vshrl.u32 %v507, 7
        %v509 = vsub.s32 0, %v508
        %v510 = vrot.slane %v506, %v509
        %v511 = vmul.f32 %v490, %v510
        %v512 = vmul.f32 %v491, %v510
        %v513 = vmul.f32 %v492, %v510
        %v514 = vmul.f32 %v493, %v510
        %v515 = vmul.f32 %v494, %v510
        %v516 = vmul.f32 %v495, %v510
        %v517 = vmul.f32 %v496, %v510
        %v518 = vmul.f32 %v497, %v510
        %v519 = vmul.f32 %v498, %v510
        %v520 = vmul.f32 %v499, %v510
        %v521 = vmul.f32 %v500, %v510
        %v522 = vmul.f32 %v501, %v510
        %v523 = vmul.f32 %v502, %v510
        %v524 = vmul.f32 %v503, %v510
        %v525 = vmul.f32 %v504, %v510
        %v526 = vmul.f32 %v505, %v510
        %v527 = vadd.f32 %v474, %v511
        %v528 = vadd.f32 %v475, %v512
        %v529 = vadd.f32 %v476, %v513
        %v530 = vadd.f32 %v477, %v514
        %v531 = vadd.f32 %v478, %v515
        %v532 = vadd.f32 %v479, %v516
        %v533 = vadd.f32 %v480, %v517
        %v534 = vadd.f32 %v481, %v518
        %v535 = vadd.f32 %v482, %v519
        %v536 = vadd.f32 %v483, %v520
        %v537 = vadd.f32 %v484, %v521
        %v538 = vadd.f32 %v485, %v522
        %v539 = vadd.f32 %v486, %v523
        %v540 = vadd.f32 %v487, %v524
        %v541 = vadd.f32 %v488, %v525
        %v542 = vadd.f32 %v489, %v526
        %v543 = vld [vmem:[%s436 + $0x2] sm:$0xff]
        %v544 = vld [vmem:[%s436 + $0xa] sm:$0xff]
        %v545 = vld [vmem:[%s436 + $0x1a] sm:$0xff]
        %v546 = vld [vmem:[%s436 + $0x22] sm:$0xff]
        %v547 = vld [vmem:[%s436 + $0x32] sm:$0xff]
        %v548 = vld [vmem:[%s436 + $0x3a] sm:$0xff]
        %v549 = vld [vmem:[%s436 + $0x4a] sm:$0xff]
        %v550 = vld [vmem:[%s436 + $0x52] sm:$0xff]
        %v551 = vld [vmem:[%s436 + $0x62] sm:$0xff]
        %v552 = vld [vmem:[%s436 + $0x6a] sm:$0xff]
        %v553 = vld [vmem:[%s436 + $0x7a] sm:$0xff]
        %v554 = vld [vmem:[%s436 + $0x82] sm:$0xff]
        %v555 = vld [vmem:[%s436 + $0x92] sm:$0xff]
        %v556 = vld [vmem:[%s436 + $0x9a] sm:$0xff]
        %v557 = vld [vmem:[%s436 + $0xaa] sm:$0xff]
        %v558 = vld [vmem:[%s436 + $0xb2] sm:$0xff]
        %v559 = vld [vmem:[#allocation5 + $0x5] sm:$0x1]
        %v560 = vlaneseq
        %v561 = vshrl.u32 %v560, 7
        %v562 = vsub.s32 0, %v561
        %v563 = vrot.slane %v559, %v562
        %v564 = vmul.f32 %v543, %v563
        %v565 = vmul.f32 %v544, %v563
        %v566 = vmul.f32 %v545, %v563
        %v567 = vmul.f32 %v546, %v563
        %v568 = vmul.f32 %v547, %v563
        %v569 = vmul.f32 %v548, %v563
        %v570 = vmul.f32 %v549, %v563
        %v571 = vmul.f32 %v550, %v563
        %v572 = vmul.f32 %v551, %v563
        %v573 = vmul.f32 %v552, %v563
        %v574 = vmul.f32 %v553, %v563
        %v575 = vmul.f32 %v554, %v563
        %v576 = vmul.f32 %v555, %v563
        %v577 = vmul.f32 %v556, %v563
        %v578 = vmul.f32 %v557, %v563
        %v579 = vmul.f32 %v558, %v563
        %v580 = vadd.f32 %v527, %v564
        %v581 = vadd.f32 %v528, %v565
        %v582 = vadd.f32 %v529, %v566
        %v583 = vadd.f32 %v530, %v567
        %v584 = vadd.f32 %v531, %v568
        %v585 = vadd.f32 %v532, %v569
        %v586 = vadd.f32 %v533, %v570
        %v587 = vadd.f32 %v534, %v571
        %v588 = vadd.f32 %v535, %v572
        %v589 = vadd.f32 %v536, %v573
        %v590 = vadd.f32 %v537, %v574
        %v591 = vadd.f32 %v538, %v575
        %v592 = vadd.f32 %v539, %v576
        %v593 = vadd.f32 %v540, %v577
        %v594 = vadd.f32 %v541, %v578
        %v595 = vadd.f32 %v542, %v579
        %s596 = sadd.s32 %s288, 2
        %s597 = smul.u32 %s596, 24
        %s598 = scalar_lea.vmem %s251, %s597 [#allocation2]
        %v599 = vld [vmem:[%s598] sm:$0xff]
        %v600 = vld [vmem:[%s598 + $0x8] sm:$0xff]
        %v601 = vld [vmem:[%s598 + $0x18] sm:$0xff]
        %v602 = vld [vmem:[%s598 + $0x20] sm:$0xff]
        %v603 = vld [vmem:[%s598 + $0x30] sm:$0xff]
        %v604 = vld [vmem:[%s598 + $0x38] sm:$0xff]
        %v605 = vld [vmem:[%s598 + $0x48] sm:$0xff]
        %v606 = vld [vmem:[%s598 + $0x50] sm:$0xff]
        %v607 = vld [vmem:[%s598 + $0x60] sm:$0xff]
        %v608 = vld [vmem:[%s598 + $0x68] sm:$0xff]
        %v609 = vld [vmem:[%s598 + $0x78] sm:$0xff]
        %v610 = vld [vmem:[%s598 + $0x80] sm:$0xff]
        %v611 = vld [vmem:[%s598 + $0x90] sm:$0xff]
        %v612 = vld [vmem:[%s598 + $0x98] sm:$0xff]
        %v613 = vld [vmem:[%s598 + $0xa8] sm:$0xff]
        %v614 = vld [vmem:[%s598 + $0xb0] sm:$0xff]
        %v615 = vld [vmem:[#allocation5 + $0x6] sm:$0x1]
        %v616 = vlaneseq
        %v617 = vshrl.u32 %v616, 7
        %v618 = vsub.s32 0, %v617
        %v619 = vrot.slane %v615, %v618
        %v620 = vmul.f32 %v599, %v619
        %v621 = vmul.f32 %v600, %v619
        %v622 = vmul.f32 %v601, %v619
        %v623 = vmul.f32 %v602, %v619
        %v624 = vmul.f32 %v603, %v619
        %v625 = vmul.f32 %v604, %v619
        %v626 = vmul.f32 %v605, %v619
        %v627 = vmul.f32 %v606, %v619
        %v628 = vmul.f32 %v607, %v619
        %v629 = vmul.f32 %v608, %v619
        %v630 = vmul.f32 %v609, %v619
        %v631 = vmul.f32 %v610, %v619
        %v632 = vmul.f32 %v611, %v619
        %v633 = vmul.f32 %v612, %v619
        %v634 = vmul.f32 %v613, %v619
        %v635 = vmul.f32 %v614, %v619
        %v636 = vadd.f32 %v580, %v620
        %v637 = vadd.f32 %v581, %v621
        %v638 = vadd.f32 %v582, %v622
        %v639 = vadd.f32 %v583, %v623
        %v640 = vadd.f32 %v584, %v624
        %v641 = vadd.f32 %v585, %v625
        %v642 = vadd.f32 %v586, %v626
        %v643 = vadd.f32 %v587, %v627
        %v644 = vadd.f32 %v588, %v628
        %v645 = vadd.f32 %v589, %v629
        %v646 = vadd.f32 %v590, %v630
        %v647 = vadd.f32 %v591, %v631
        %v648 = vadd.f32 %v592, %v632
        %v649 = vadd.f32 %v593, %v633
        %v650 = vadd.f32 %v594, %v634
        %v651 = vadd.f32 %v595, %v635
        %v652 = vld [vmem:[%s598 + $0x1] sm:$0xff]
        %v653 = vld [vmem:[%s598 + $0x9] sm:$0xff]
        %v654 = vld [vmem:[%s598 + $0x19] sm:$0xff]
        %v655 = vld [vmem:[%s598 + $0x21] sm:$0xff]
        %v656 = vld [vmem:[%s598 + $0x31] sm:$0xff]
        %v657 = vld [vmem:[%s598 + $0x39] sm:$0xff]
        %v658 = vld [vmem:[%s598 + $0x49] sm:$0xff]
        %v659 = vld [vmem:[%s598 + $0x51] sm:$0xff]
        %v660 = vld [vmem:[%s598 + $0x61] sm:$0xff]
        %v661 = vld [vmem:[%s598 + $0x69] sm:$0xff]
        %v662 = vld [vmem:[%s598 + $0x79] sm:$0xff]
        %v663 = vld [vmem:[%s598 + $0x81] sm:$0xff]
        %v664 = vld [vmem:[%s598 + $0x91] sm:$0xff]
        %v665 = vld [vmem:[%s598 + $0x99] sm:$0xff]
        %v666 = vld [vmem:[%s598 + $0xa9] sm:$0xff]
        %v667 = vld [vmem:[%s598 + $0xb1] sm:$0xff]
        %v668 = vld [vmem:[#allocation5 + $0x7] sm:$0x1]
        %v669 = vlaneseq
        %v670 = vshrl.u32 %v669, 7
        %v671 = vsub.s32 0, %v670
        %v672 = vrot.slane %v668, %v671
        %v673 = vmul.f32 %v652, %v672
        %v674 = vmul.f32 %v653, %v672
        %v675 = vmul.f32 %v654, %v672
        %v676 = vmul.f32 %v655, %v672
        %v677 = vmul.f32 %v656, %v672
        %v678 = vmul.f32 %v657, %v672
        %v679 = vmul.f32 %v658, %v672
        %v680 = vmul.f32 %v659, %v672
        %v681 = vmul.f32 %v660, %v672
        %v682 = vmul.f32 %v661, %v672
        %v683 = vmul.f32 %v662, %v672
        %v684 = vmul.f32 %v663, %v672
        %v685 = vmul.f32 %v664, %v672
        %v686 = vmul.f32 %v665, %v672
        %v687 = vmul.f32 %v666, %v672
        %v688 = vmul.f32 %v667, %v672
        %v689 = vadd.f32 %v636, %v673
        %v690 = vadd.f32 %v637, %v674
        %v691 = vadd.f32 %v638, %v675
        %v692 = vadd.f32 %v639, %v676
        %v693 = vadd.f32 %v640, %v677
        %v694 = vadd.f32 %v641, %v678
        %v695 = vadd.f32 %v642, %v679
        %v696 = vadd.f32 %v643, %v680
        %v697 = vadd.f32 %v644, %v681
        %v698 = vadd.f32 %v645, %v682
        %v699 = vadd.f32 %v646, %v683
        %v700 = vadd.f32 %v647, %v684
        %v701 = vadd.f32 %v648, %v685
        %v702 = vadd.f32 %v649, %v686
        %v703 = vadd.f32 %v650, %v687
        %v704 = vadd.f32 %v651, %v688
        %v705 = vld [vmem:[%s598 + $0x2] sm:$0xff]
        %v706 = vld [vmem:[%s598 + $0xa] sm:$0xff]
        %v707 = vld [vmem:[%s598 + $0x1a] sm:$0xff]
        %v708 = vld [vmem:[%s598 + $0x22] sm:$0xff]
        %v709 = vld [vmem:[%s598 + $0x32] sm:$0xff]
        %v710 = vld [vmem:[%s598 + $0x3a] sm:$0xff]
        %v711 = vld [vmem:[%s598 + $0x4a] sm:$0xff]
        %v712 = vld [vmem:[%s598 + $0x52] sm:$0xff]
        %v713 = vld [vmem:[%s598 + $0x62] sm:$0xff]
        %v714 = vld [vmem:[%s598 + $0x6a] sm:$0xff]
        %v715 = vld [vmem:[%s598 + $0x7a] sm:$0xff]
        %v716 = vld [vmem:[%s598 + $0x82] sm:$0xff]
        %v717 = vld [vmem:[%s598 + $0x92] sm:$0xff]
        %v718 = vld [vmem:[%s598 + $0x9a] sm:$0xff]
        %v719 = vld [vmem:[%s598 + $0xaa] sm:$0xff]
        %v720 = vld [vmem:[%s598 + $0xb2] sm:$0xff]
        %v721 = vld [vmem:[#allocation5 + $0x8] sm:$0x1]
        %v722 = vlaneseq
        %v723 = vshrl.u32 %v722, 7
        %v724 = vsub.s32 0, %v723
        %v725 = vrot.slane %v721, %v724
        %v726 = vmul.f32 %v705, %v725
        %v727 = vmul.f32 %v706, %v725
        %v728 = vmul.f32 %v707, %v725
        %v729 = vmul.f32 %v708, %v725
        %v730 = vmul.f32 %v709, %v725
        %v731 = vmul.f32 %v710, %v725
        %v732 = vmul.f32 %v711, %v725
        %v733 = vmul.f32 %v712, %v725
        %v734 = vmul.f32 %v713, %v725
        %v735 = vmul.f32 %v714, %v725
        %v736 = vmul.f32 %v715, %v725
        %v737 = vmul.f32 %v716, %v725
        %v738 = vmul.f32 %v717, %v725
        %v739 = vmul.f32 %v718, %v725
        %v740 = vmul.f32 %v719, %v725
        %v741 = vmul.f32 %v720, %v725
        %v742 = vadd.f32 %v689, %v726
        %v743 = vadd.f32 %v690, %v727
        %v744 = vadd.f32 %v691, %v728
        %v745 = vadd.f32 %v692, %v729
        %v746 = vadd.f32 %v693, %v730
        %v747 = vadd.f32 %v694, %v731
        %v748 = vadd.f32 %v695, %v732
        %v749 = vadd.f32 %v696, %v733
        %v750 = vadd.f32 %v697, %v734
        %v751 = vadd.f32 %v698, %v735
        %v752 = vadd.f32 %v699, %v736
        %v753 = vadd.f32 %v700, %v737
        %v754 = vadd.f32 %v701, %v738
        %v755 = vadd.f32 %v702, %v739
        %v756 = vadd.f32 %v703, %v740
        %v757 = vadd.f32 %v704, %v741
        %v758 = vld [vmem:[%s2] sm:$0x1]
        %v760 = vlaneseq
        %v761 = vshrl.u32 %v760, 7
        %v762 = vsub.s32 0, %v761
        %v763 = vrot.slane %v758, %v762
        %v765 = vadd.f32 %v742, %v763
        %v766 = vadd.f32 %v743, %v763
        %v767 = vadd.f32 %v744, %v763
        %v768 = vadd.f32 %v745, %v763
        %v769 = vadd.f32 %v746, %v763
        %v770 = vadd.f32 %v747, %v763
        %v771 = vadd.f32 %v748, %v763
        %v772 = vadd.f32 %v749, %v763
        %v773 = vadd.f32 %v750, %v763
        %v774 = vadd.f32 %v751, %v763
        %v775 = vadd.f32 %v752, %v763
        %v776 = vadd.f32 %v753, %v763
        %v777 = vadd.f32 %v754, %v763
        %v778 = vadd.f32 %v755, %v763
        %v779 = vadd.f32 %v756, %v763
        %v780 = vadd.f32 %v757, %v763
        %v781 = vmax.f32 %v765, 0.0
        %v782 = vmax.f32 %v766, 0.0
        %v783 = vmax.f32 %v767, 0.0
        %v784 = vmax.f32 %v768, 0.0
        %v785 = vmax.f32 %v769, 0.0
        %v786 = vmax.f32 %v770, 0.0
        %v787 = vmax.f32 %v771, 0.0
        %v788 = vmax.f32 %v772, 0.0
        %v789 = vmax.f32 %v773, 0.0
        %v790 = vmax.f32 %v774, 0.0
        %v791 = vmax.f32 %v775, 0.0
        %v792 = vmax.f32 %v776, 0.0
        %v793 = vmax.f32 %v777, 0.0
        %v794 = vmax.f32 %v778, 0.0
        %v795 = vmax.f32 %v779, 0.0
        %v796 = vmax.f32 %v780, 0.0
        %v797 = vpack.c.bf16 %v782, %v781
        %v798 = vpack.c.bf16 %v784, %v783
        %v799 = vpack.c.bf16 %v786, %v785
        %v800 = vpack.c.bf16 %v788, %v787
        %v801 = vpack.c.bf16 %v790, %v789
        %v802 = vpack.c.bf16 %v792, %v791
        %v803 = vpack.c.bf16 %v794, %v793
        %v804 = vpack.c.bf16 %v796, %v795
        %v805 = vld [vmem:[#allocation7] sm:$0xf]
        %v806 = vld [vmem:[#allocation7 + $0x4] sm:$0xf]
        %v807 = vld [vmem:[#allocation7 + $0x8] sm:$0xf]
        %v808 = vld [vmem:[#allocation7 + $0xc] sm:$0xf]
        %v809 = vld [vmem:[#allocation7 + $0x10] sm:$0xf]
        %v810 = vld [vmem:[#allocation7 + $0x14] sm:$0xf]
        %v811 = vld [vmem:[#allocation7 + $0x18] sm:$0xf]
        %v812 = vld [vmem:[#allocation7 + $0x1c] sm:$0xf]
        %v813 = vld [vmem:[#allocation7 + $0x20] sm:$0xf]
        %v814 = vld [vmem:[#allocation7 + $0x24] sm:$0xf]
        %v815 = vld [vmem:[#allocation7 + $0x28] sm:$0xf]
        %v816 = vld [vmem:[#allocation7 + $0x2c] sm:$0xf]
        %v817 = vld [vmem:[#allocation7 + $0x30] sm:$0xf]
        %v818 = vld [vmem:[#allocation7 + $0x34] sm:$0xf]
        %v819 = vld [vmem:[#allocation7 + $0x38] sm:$0xf]
        %v820 = vld [vmem:[#allocation7 + $0x3c] sm:$0xf]
        %v821 = vld [vmem:[%s4] sm:$0x1]
        %v823 = vlaneseq
        %v824 = vshrl.u32 %v823, 7
        %v825 = vsub.s32 0, %v824
        %v826 = vrot.slane %v821, %v825
        %v844 = vunpack.c.l.b16 %v805
        %v845 = vunpack.c.l.b16 %v806
        %v846 = vunpack.c.l.b16 %v807
        %v847 = vunpack.c.l.b16 %v808
        %v848 = vunpack.c.l.b16 %v809
        %v849 = vunpack.c.l.b16 %v810
        %v850 = vunpack.c.l.b16 %v811
        %v851 = vunpack.c.l.b16 %v812
        %v852 = vunpack.c.l.b16 %v813
        %v853 = vunpack.c.l.b16 %v814
        %v854 = vunpack.c.l.b16 %v815
        %v855 = vunpack.c.l.b16 %v816
        %v856 = vunpack.c.l.b16 %v817
        %v857 = vunpack.c.l.b16 %v818
        %v858 = vunpack.c.l.b16 %v819
        %v859 = vunpack.c.l.b16 %v820
        %v860 = vpack.c.b16 %v845, %v844
        %v861 = vpack.c.b16 %v847, %v846
        %v862 = vpack.c.b16 %v849, %v848
        %v863 = vpack.c.b16 %v851, %v850
        %v864 = vpack.c.b16 %v853, %v852
        %v865 = vpack.c.b16 %v855, %v854
        %v866 = vpack.c.b16 %v857, %v856
        %v867 = vpack.c.b16 %v859, %v858
        %876 = vmatprep.subr.bf16.mxu0 0
        %877 = vmatpush1.bf16.msra.mxu0 %v860
        %878 = vmatprep.subr.bf16.mxu0 0
        %879 = vmatpush1.bf16.msra.mxu0 %v861
        %880 = vmatprep.subr.bf16.mxu0 0
        %881 = vmatpush1.bf16.msra.mxu0 %v862
        %882 = vmatprep.subr.bf16.mxu0 0
        %883 = vmatpush1.bf16.msra.mxu0 %v863
        %884 = vmatprep.subr.bf16.mxu0 0
        %885 = vmatpush1.bf16.msra.mxu0 %v864
        %886 = vmatprep.subr.bf16.mxu0 0
        %887 = vmatpush1.bf16.msra.mxu0 %v865
        %888 = vmatprep.subr.bf16.mxu0 0
        %889 = vmatpush1.bf16.msra.mxu0 %v866
        %890 = vmatprep.subr.bf16.mxu0 0
        %891 = vmatpush1.bf16.msra.mxu0 %v867
        %892 = vmatprep.subr.bf16.mxu0 0
        %893 = vmatpush1.bf16.msra.mxu0 0
        %894 = vmatprep.subr.bf16.mxu0 0
        %895 = vmatpush1.bf16.msra.mxu0 0
        %896 = vmatprep.subr.bf16.mxu0 0
        %897 = vmatpush1.bf16.msra.mxu0 0
        %898 = vmatprep.subr.bf16.mxu0 0
        %899 = vmatpush1.bf16.msra.mxu0 0
        %900 = vmatprep.subr.bf16.mxu0 0
        %901 = vmatpush1.bf16.msra.mxu0 0
        %902 = vmatprep.subr.bf16.mxu0 0
        %903 = vmatpush1.bf16.msra.mxu0 0
        %904 = vmatprep.subr.bf16.mxu0 0
        %905 = vmatpush1.bf16.msra.mxu0 0
        %906 = vmatprep.subr.bf16.mxu0 0
        %907 = vmatpush1.bf16.msra.mxu0 0
        %908 = vmatprep.mubr.bf16.mxu0 0
        %909 = vmatmul.mubr.bf16.gmra.mrb[0].mxu0 %v797
        %v910 = vpop.f32.mrb[0].mxu0
        %v911 = vadd.f32 %v826, %v910
        %v912 = vpop.f32.mrb[0].mxu0
        %v913 = vpop.f32.mrb[0].mxu0
        %v914 = vadd.f32 %v826, %v913
        %v915 = vpop.f32.mrb[0].mxu0
        %916 = vmatprep.mubr.bf16.mxu0 0
        %917 = vmatmul.mubr.bf16.gmra.mrb[0].mxu0 %v798
        %v918 = vpop.f32.mrb[0].mxu0
        %v919 = vadd.f32 %v826, %v918
        %v920 = vpop.f32.mrb[0].mxu0
        %v921 = vpop.f32.mrb[0].mxu0
        %v922 = vadd.f32 %v826, %v921
        %v923 = vpop.f32.mrb[0].mxu0
        %924 = vmatprep.mubr.bf16.mxu0 0
        %925 = vmatmul.mubr.bf16.gmra.mrb[0].mxu0 %v799
        %v926 = vpop.f32.mrb[0].mxu0
        %v927 = vadd.f32 %v826, %v926
        %v928 = vpop.f32.mrb[0].mxu0
        %v929 = vpop.f32.mrb[0].mxu0
        %v930 = vadd.f32 %v826, %v929
        %v931 = vpop.f32.mrb[0].mxu0
        %932 = vmatprep.mubr.bf16.mxu0 0
        %933 = vmatmul.mubr.bf16.gmra.mrb[0].mxu0 %v800
        %v934 = vpop.f32.mrb[0].mxu0
        %v935 = vadd.f32 %v826, %v934
        %v936 = vpop.f32.mrb[0].mxu0
        %v937 = vpop.f32.mrb[0].mxu0
        %v938 = vadd.f32 %v826, %v937
        %v939 = vpop.f32.mrb[0].mxu0
        %940 = vmatprep.mubr.bf16.mxu0 0
        %941 = vmatmul.mubr.bf16.gmra.mrb[0].mxu0 %v801
        %v942 = vpop.f32.mrb[0].mxu0
        %v943 = vadd.f32 %v826, %v942
        %v944 = vpop.f32.mrb[0].mxu0
        %v945 = vpop.f32.mrb[0].mxu0
        %v946 = vadd.f32 %v826, %v945
        %v947 = vpop.f32.mrb[0].mxu0
        %948 = vmatprep.mubr.bf16.mxu0 0
        %949 = vmatmul.mubr.bf16.gmra.mrb[0].mxu0 %v802
        %v950 = vpop.f32.mrb[0].mxu0
        %v951 = vadd.f32 %v826, %v950
        %v952 = vpop.f32.mrb[0].mxu0
        %v953 = vpop.f32.mrb[0].mxu0
        %v954 = vadd.f32 %v826, %v953
        %v955 = vpop.f32.mrb[0].mxu0
        %956 = vmatprep.mubr.bf16.mxu0 0
        %957 = vmatmul.mubr.bf16.gmra.mrb[0].mxu0 %v803
        %v958 = vpop.f32.mrb[0].mxu0
        %v959 = vadd.f32 %v826, %v958
        %v960 = vpop.f32.mrb[0].mxu0
        %v961 = vpop.f32.mrb[0].mxu0
        %v962 = vadd.f32 %v826, %v961
        %v963 = vpop.f32.mrb[0].mxu0
        %964 = vmatprep.mubr.bf16.mxu0 0
        %965 = vmatmul.mubr.bf16.gmra.mrb[0].mxu0 %v804
        %v966 = vpop.f32.mrb[0].mxu0
        %v967 = vadd.f32 %v826, %v966
        %v968 = vpop.f32.mrb[0].mxu0
        %v969 = vpop.f32.mrb[0].mxu0
        %v970 = vadd.f32 %v826, %v969
        %v971 = vpop.f32.mrb[0].mxu0
        %972 = vdwg.mxu0
        %v973 = vmax.f32 %v911, 0.0
        %v974 = vmax.f32 %v914, 0.0
        %v975 = vmax.f32 %v919, 0.0
        %v976 = vmax.f32 %v922, 0.0
        %v977 = vmax.f32 %v927, 0.0
        %v978 = vmax.f32 %v930, 0.0
        %v979 = vmax.f32 %v935, 0.0
        %v980 = vmax.f32 %v938, 0.0
        %v981 = vmax.f32 %v943, 0.0
        %v982 = vmax.f32 %v946, 0.0
        %v983 = vmax.f32 %v951, 0.0
        %v984 = vmax.f32 %v954, 0.0
        %v985 = vmax.f32 %v959, 0.0
        %v986 = vmax.f32 %v962, 0.0
        %v987 = vmax.f32 %v967, 0.0
        %v988 = vmax.f32 %v970, 0.0
        %989 = vst [vmem:[%s285] sm:$0xff] %v973
        %990 = vst [vmem:[%s285 + $0x8] sm:$0xff] %v974
        %991 = vst [vmem:[%s285 + $0x10] sm:$0xff] %v975
        %992 = vst [vmem:[%s285 + $0x18] sm:$0xff] %v976
        %993 = vst [vmem:[%s285 + $0x20] sm:$0xff] %v977
        %994 = vst [vmem:[%s285 + $0x28] sm:$0xff] %v978
        %995 = vst [vmem:[%s285 + $0x30] sm:$0xff] %v979
        %996 = vst [vmem:[%s285 + $0x38] sm:$0xff] %v980
        %997 = vst [vmem:[%s285 + $0x40] sm:$0xff] %v981
        %998 = vst [vmem:[%s285 + $0x48] sm:$0xff] %v982
        %999 = vst [vmem:[%s285 + $0x50] sm:$0xff] %v983
        %1000 = vst [vmem:[%s285 + $0x58] sm:$0xff] %v984
        %1001 = vst [vmem:[%s285 + $0x60] sm:$0xff] %v985
        %1002 = vst [vmem:[%s285 + $0x68] sm:$0xff] %v986
        %1003 = vst [vmem:[%s285 + $0x70] sm:$0xff] %v987
        %1004 = vst [vmem:[%s285 + $0x78] sm:$0xff] %v988
        %s1005 = sand.u32 %s155, 1
        %s1006 = scalar_lea.sflag [#allocation4], %s1005
        %s1007 = sand.u32 %s155, 1
        %s1008 = smul.addr %s1007, 128
        %s1009 = scalar_lea.vmem [#allocation8], %s1008
        // Predicated region
        $region53: #{tpu_custom_call.1} parent=39 // pred_check
          %p1010 = pneg %p165
        $region54: #{tpu_custom_call.1} parent=39 // pred_check_branch
          %1012 = sbr.rel (%p1010) target = $region56
        $region55: #{tpu_custom_call.1} parent=39 // pred_region
          %s1013 = smul.u32 8, %s28
          %s1015 = ssub.s32 2048, 2048
          %1016 = vsyncadd %s1006, %s1015
          %s1017 = smul.addr %s1013, 2
          %s1018 = smul.addr %s27, 32
          %s1019 = sadd.s32 %s1017, %s1018
          %s1020 = smul.addr %s1019, 128
          %s1021 = scalar_lea.hbm %s5, %s1020
          %s1022 = sshll.u32 %s1009, 4
          %s1023 = int_to_ptr.vmem [resolvable:$true] %s1022
          %1028 = dma.vmem_to_hbm [thread:$0]  %s1023, 2048, %s1021, %s1006, 128, 128, 8
        $region56: #{tpu_custom_call.1} parent=39 // pred_fallthru
          _
      $region40: #{tpu_custom_call.1} parent=5 // pred_fallthru
        _
      %p1029 = scmp.le.s32.totalorder 2, %s18
      // Predicated region
      $region57: #{tpu_custom_call.1} parent=5 // pred_check
        %p1030 = pneg %p1029
      $region58: #{tpu_custom_call.1} parent=5 // pred_check_branch
        %1032 = sbr.rel (%p1030) target = $region60
      $region59: #{tpu_custom_call.1} parent=5 // pred_region
        %s1033 = ssub.s32 %s18, 2
        // Predicated region
        $region61: #{tpu_custom_call.1} parent=59 // pred_check
          %p1034 = pneg %p171
        $region62: #{tpu_custom_call.1} parent=59 // pred_check_branch
          %1036 = sbr.rel (%p1034) target = $region64
        $region63: #{tpu_custom_call.1} parent=59 // pred_region
          %s1037 = sand.u32 %s156, 1
          %s1038 = scalar_lea.sflag [#allocation4], %s1037
          %s1039 = sand.u32 %s156, 1
          %s1040 = smul.addr %s1039, 128
          %s1041 = scalar_lea.vmem [#allocation8], %s1040
          %1042 = dma.done %s1038, 2048
        $region64: #{tpu_custom_call.1} parent=59 // pred_fallthru
          _
      $region60: #{tpu_custom_call.1} parent=5 // pred_fallthru
        _
    $region6: #{tpu_custom_call.1} parent=1 // loop_footer
      %s22 = sadd.s32 1, %s18
    $region7: #{tpu_custom_call.1} parent=1 // loop_footer_branch
      %17 = sbr.rel target = $region3
    $region8: #{tpu_custom_call.1} parent=1 // loop_exit
      _
    %1043 = vsyncpa [#allocation3], 1
    %s1044 = scalar_lea.sflag [#allocation3], 1
    %1045 = vsyncpa %s1044, 1
    %1046 = vsyncpa [#allocation6], 1
    %1047 = vsyncpa [#allocation4], 1
    %s1048 = scalar_lea.sflag [#allocation4], 1
    %1049 = vsyncpa %s1048, 1

</llo_original>
